<compile_context>
chip_gen: v7x
topology: tpu7x:2x2x1
jax: 0.10.0
libtpu: 0.0.40
codegen_flags: <defaults>
</compile_context>

<pallas_src>
import functools

import jax
import jax.numpy as jnp
from jax.experimental import pallas as pl
from jax.experimental.pallas import tpu as pltpu


LANE_PAD = 128  # pad tiny output dims (num_labels) to a full lane width


# ----------------------------- in-kernel helpers ----------------------------

def _layernorm(h, gamma, beta, eps):
    """LayerNorm over the last axis (f32 statistics)."""
    mean = jnp.mean(h, axis=-1, keepdims=True)
    var = jnp.mean((h - mean) * (h - mean), axis=-1, keepdims=True)
    return (h - mean) * jax.lax.rsqrt(var + eps) * gamma + beta


def _gelu(x):
    # TODO(synk): HF BERT default hidden_act='gelu' is the exact erf GELU; the
    # tanh approximation below differs by <1e-3 relative (kept for robust
    # Mosaic lowering).
    return 0.5 * x * (1.0 + jnp.tanh(0.7978845608028654 *
                                     (x + 0.044715 * x * x * x)))


# ----------------------------- Pallas kernels ------------------------------

def _emb_layernorm_kernel(x_ref, g_ref, b_ref, o_ref, *, eps):
    """Residual-free LayerNorm for the embedding output (bf16 store)."""
    o_ref[...] = _layernorm(x_ref[...], g_ref[...], b_ref[...], eps).astype(o_ref.dtype)


def _encoder_stack_kernel(x_ref, m_ref,
                          wqkv_ref, bqkv_ref, wo_ref, bo_ref,
                          ln1g_ref, ln1b_ref,
                          wi_ref, bi_ref, wf_ref, bf_ref,
                          ln2g_ref, ln2b_ref,
                          o_ref, h_ref, ctx_ref,
                          *, num_heads, num_layers, eps):
    """All encoder layers for one batch element; grid = (batch, layer).

    The residual stream is carried across the layer axis in the f32 VMEM
    scratch `h_ref`; per-layer weights are streamed in via the layer-indexed
    BlockSpecs (double-buffered -> next layer's weights prefetch during this
    layer's compute).
    """
    l = pl.program_id(1)

    @pl.when(l == 0)
    def _():
        h_ref[...] = x_ref[0].astype(jnp.float32)

    x = h_ref[...]                                   # (S, H) f32 residual
    S, H = x.shape
    Dh = H // num_heads
    scale = 1.0 / (Dh ** 0.5)

    # ---- fused QKV projection: one (S,H)x(H,3H) matmul (bf16 MXU, f32 acc) ----
    qkv = jnp.dot(x.astype(jnp.bfloat16), wqkv_ref[0],
                  preferred_element_type=jnp.float32) + bqkv_ref[...]   # (S, 3H)
    q = qkv[:, :H]
    k = qkv[:, H:2 * H]
    v = qkv[:, 2 * H:]

    # Hoisted additive-mask broadcast (once per layer, not once per head).
    mask_b = jnp.broadcast_to(m_ref[0], (S, S))

    # ---- per-head attention: contexts written to a concatenated ctx buffer ----
    # TODO(synk): for many-head configs (BERT-base nH=12) switch this static
    # unroll to a fori_loop over head groups to bound bundle count / vreg
    # pressure; at nH=2 the unroll is negligible.
    for h in range(num_heads):
        sl = slice(h * Dh, (h + 1) * Dh)
        qh = q[:, sl].astype(jnp.bfloat16)
        kh = k[:, sl].astype(jnp.bfloat16)
        vh = v[:, sl].astype(jnp.bfloat16)
        # contract last dims of q and k directly (no XLU transpose)
        s = jax.lax.dot_general(qh, kh, (((1,), (1,)), ((), ())),
                                preferred_element_type=jnp.float32) * scale
        s = s + mask_b
        s = s - jnp.max(s, axis=-1, keepdims=True)
        p = jnp.exp(s)
        p = p * pl.reciprocal(jnp.sum(p, axis=-1, keepdims=True), approx=True)
        ctx_ref[:, sl] = jnp.dot(p.astype(jnp.bfloat16), vh,
                                 preferred_element_type=jnp.float32)     # (S, Dh)

    # ---- ONE full-K output projection: ctx(S,H) @ Wo(H,H) ----
    attn = jnp.dot(ctx_ref[...].astype(jnp.bfloat16), wo_ref[0],
                   preferred_element_type=jnp.float32) + bo_ref[...]

    # ---- residual + LayerNorm 1 (f32 stats) ----
    h1 = _layernorm(x + attn, ln1g_ref[...], ln1b_ref[...], eps)

    # ---- FFN: dense -> gelu -> dense, intermediate stays in vregs/VMEM ----
    inter = _gelu(jnp.dot(h1.astype(jnp.bfloat16), wi_ref[0],
                          preferred_element_type=jnp.float32) + bi_ref[...])
    ff = jnp.dot(inter.astype(jnp.bfloat16), wf_ref[0],
                 preferred_element_type=jnp.float32) + bf_ref[...]

    # ---- residual + LayerNorm 2 ----
    out = _layernorm(h1 + ff, ln2g_ref[...], ln2b_ref[...], eps)
    h_ref[...] = out

    @pl.when(l == num_layers - 1)
    def _():
        o_ref[0] = out.astype(o_ref.dtype)          # bf16 activation to HBM


def _head_kernel(x_ref, pw_ref, pb_ref, cw_ref, cb_ref, o_ref):
    """Pooler (dense + tanh on CLS) + Dropout(eval=identity) + classifier."""
    pooled = jnp.tanh(jnp.dot(x_ref[...], pw_ref[...],
                              preferred_element_type=jnp.float32) + pb_ref[...])
    # Dropout(p=0.3) is identity in eval/inference mode.
    o_ref[...] = jnp.dot(pooled.astype(jnp.bfloat16), cw_ref[...],
                         preferred_element_type=jnp.float32) + cb_ref[...]


# ------------------------------- wrappers -----------------------------------

def embedding_layernorm(x2d, gamma, beta, eps=1e-12):
    """Row-tiled LayerNorm: parallel grid over 512-row tiles at real sizes."""
    M, H = x2d.shape
    TM = min(512, M)
    return pl.pallas_call(
        functools.partial(_emb_layernorm_kernel, eps=eps),
        out_shape=jax.ShapeDtypeStruct((M, H), jnp.bfloat16),
        grid=(pl.cdiv(M, TM),),
        in_specs=[
            pl.BlockSpec((TM, H), lambda i: (i, 0)),
            pl.BlockSpec((1, H), lambda i: (0, 0)),
            pl.BlockSpec((1, H), lambda i: (0, 0)),
        ],
        out_specs=pl.BlockSpec((TM, H), lambda i: (i, 0)),
        compiler_params=pltpu.CompilerParams(dimension_semantics=("parallel",)),
    )(x2d, gamma, beta)


def encoder_stack(x, add_mask, pp, cfg):
    """x: (B, S, H) bf16, add_mask: (B, 1, S) f32. One pallas_call, all layers."""
    B, S, H = x.shape
    I = cfg["intermediate"]
    L = cfg["layers"]
    nH = cfg["heads"]

    # VMEM budget: double-buffered per-layer weights (bf16) + biases/LN (f32)
    # + double-buffered activation blocks + f32 scratches + compiler headroom.
    w_bytes = 2 * ((H * 3 * H + H * H + H * I + I * H) * 2
                   + (3 * H + H + I + 5 * H) * 4)
    a_bytes = 2 * 2 * (S * H * 2) + 2 * (S * 4) + 2 * (S * H * 4)
    vmem_limit = int(min(100 << 20, max(32 << 20, w_bytes + a_bytes + (8 << 20))))

    kernel = functools.partial(_encoder_stack_kernel,
                               num_heads=nH, num_layers=L, eps=1e-12)
    return pl.pallas_call(
        kernel,
        out_shape=jax.ShapeDtypeStruct((B, S, H), jnp.bfloat16),
        grid=(B, L),                                 # batch parallel, layers inner
        in_specs=[
            pl.BlockSpec((1, S, H), lambda b, l: (b, 0, 0)),      # hidden (bf16)
            pl.BlockSpec((1, 1, S), lambda b, l: (b, 0, 0)),      # additive mask
            pl.BlockSpec((1, H, 3 * H), lambda b, l: (l, 0, 0)),  # wqkv (bf16)
            pl.BlockSpec((1, 3 * H), lambda b, l: (l, 0)),        # bqkv
            pl.BlockSpec((1, H, H), lambda b, l: (l, 0, 0)),      # wo (bf16)
            pl.BlockSpec((1, H), lambda b, l: (l, 0)),            # bo
            pl.BlockSpec((1, H), lambda b, l: (l, 0)),            # ln1 gamma
            pl.BlockSpec((1, H), lambda b, l: (l, 0)),            # ln1 beta
            pl.BlockSpec((1, H, I), lambda b, l: (l, 0, 0)),      # wi (bf16)
            pl.BlockSpec((1, I), lambda b, l: (l, 0)),            # bi
            pl.BlockSpec((1, I, H), lambda b, l: (l, 0, 0)),      # wf (bf16)
            pl.BlockSpec((1, H), lambda b, l: (l, 0)),            # bf
            pl.BlockSpec((1, H), lambda b, l: (l, 0)),            # ln2 gamma
            pl.BlockSpec((1, H), lambda b, l: (l, 0)),            # ln2 beta
        ],
        out_specs=pl.BlockSpec((1, S, H), lambda b, l: (b, 0, 0)),
        scratch_shapes=[pltpu.VMEM((S, H), jnp.float32),          # residual stream
                        pltpu.VMEM((S, H), jnp.float32)],         # concat'd ctx
        compiler_params=pltpu.CompilerParams(
            dimension_semantics=("parallel", "arbitrary"),
            vmem_limit_bytes=vmem_limit),
    )(x, add_mask,
      pp["wqkv"], pp["bqkv"], pp["wo"], pp["bo"],
      pp["ln1_g"], pp["ln1_b"], pp["wi"], pp["bi"], pp["wf"], pp["bf"],
      pp["ln2_g"], pp["ln2_b"])


def pooler_classifier(cls_tok, pp, num_labels):
    """Fused pooler + dropout(identity) + classifier; label dim lane-padded."""
    B, H = cls_tok.shape
    logits_pad = pl.pallas_call(
        _head_kernel,
        out_shape=jax.ShapeDtypeStruct((B, LANE_PAD), jnp.float32),
        grid=(1,),
        in_specs=[
            pl.BlockSpec((B, H), lambda i: (0, 0)),
            pl.BlockSpec((H, H), lambda i: (0, 0)),
            pl.BlockSpec((1, H), lambda i: (0, 0)),
            pl.BlockSpec((H, LANE_PAD), lambda i: (0, 0)),
            pl.BlockSpec((1, LANE_PAD), lambda i: (0, 0)),
        ],
        out_specs=pl.BlockSpec((B, LANE_PAD), lambda i: (0, 0)),
    )(cls_tok, pp["pooler_w"], pp["pooler_b"], pp["cls_w_pad"], pp["cls_b_pad"])
    return logits_pad[:, :num_labels]


# --------------------------- parameter setup (glue) -------------------------

CFG = dict(vocab=100, max_pos=16, type_vocab=2, hidden=32, heads=2,
           layers=2, intermediate=64, num_labels=6)


def init_params(key, cfg):
    def nrm(k, shape):
        return 0.02 * jax.random.normal(k, shape, dtype=jnp.float32)

    H, I, L = cfg["hidden"], cfg["intermediate"], cfg["num_labels"]
    keys = iter(jax.random.split(key, 8 + 10 * cfg["layers"]))
    p = {
        "word_emb": nrm(next(keys), (cfg["vocab"], H)),
        "pos_emb": nrm(next(keys), (cfg["max_pos"], H)),
        "type_emb": nrm(next(keys), (cfg["type_vocab"], H)),
        "emb_ln_g": jnp.ones((H,), jnp.float32),
        "emb_ln_b": jnp.zeros((H,), jnp.float32),
        "pooler_w": nrm(next(keys), (H, H)),
        "pooler_b": jnp.zeros((H,), jnp.float32),
        "cls_w": nrm(next(keys), (H, L)),
        "cls_b": jnp.zeros((L,), jnp.float32),
        "layers": [],
    }
    for _ in range(cfg["layers"]):
        p["layers"].append({
            "wq": nrm(next(keys), (H, H)), "bq": jnp.zeros((H,), jnp.float32),
            "wk": nrm(next(keys), (H, H)), "bk": jnp.zeros((H,), jnp.float32),
            "wv": nrm(next(keys), (H, H)), "bv": jnp.zeros((H,), jnp.float32),
            "wo": nrm(next(keys), (H, H)), "bo": jnp.zeros((H,), jnp.float32),
            "ln1_g": jnp.ones((H,), jnp.float32), "ln1_b": jnp.zeros((H,), jnp.float32),
            "wi": nrm(next(keys), (H, I)), "bi": jnp.zeros((I,), jnp.float32),
            "wf": nrm(next(keys), (I, H)), "bf": jnp.zeros((H,), jnp.float32),
            "ln2_g": jnp.ones((H,), jnp.float32), "ln2_b": jnp.zeros((H,), jnp.float32),
        })
    return p


def pack_params(params, cfg):
    """One-time weight repack (hoisted out of the forward path):
    QKV fusion, layer stacking, bf16 casts, bias reshapes, lane-padded head."""
    H = cfg["hidden"]
    L = cfg["num_labels"]
    bf16 = jnp.bfloat16
    layers = params["layers"]
    stack = lambda key: jnp.stack([lp[key] for lp in layers])
    return {
        "word_emb": params["word_emb"],
        "pos_emb": params["pos_emb"],
        "type_emb": params["type_emb"],
        "emb_ln_g": params["emb_ln_g"].reshape(1, H),
        "emb_ln_b": params["emb_ln_b"].reshape(1, H),
        # Encoder weights stacked over layers; MXU operands pre-cast to bf16.
        "wqkv": jnp.stack([jnp.concatenate([lp["wq"], lp["wk"], lp["wv"]], axis=1)
                           for lp in layers]).astype(bf16),          # (L, H, 3H)
        "bqkv": jnp.stack([jnp.concatenate([lp["bq"], lp["bk"], lp["bv"]])
                           for lp in layers]),                        # (L, 3H)
        "wo": stack("wo").astype(bf16),
        "bo": stack("bo"),
        "ln1_g": stack("ln1_g"), "ln1_b": stack("ln1_b"),
        "wi": stack("wi").astype(bf16), "bi": stack("bi"),
        "wf": stack("wf").astype(bf16), "bf": stack("bf"),
        "ln2_g": stack("ln2_g"), "ln2_b": stack("ln2_b"),
        # Head: pooler bf16, classifier lane-padded to 128 and cast once.
        "pooler_w": params["pooler_w"].astype(bf16),
        "pooler_b": params["pooler_b"].reshape(1, H),
        "cls_w_pad": jnp.zeros((H, LANE_PAD), jnp.float32)
                       .at[:, :L].set(params["cls_w"]).astype(bf16),
        "cls_b_pad": jnp.zeros((1, LANE_PAD), jnp.float32)
                       .at[0, :L].set(params["cls_b"]),
    }


# ------------------------------- forward pass -------------------------------

def bert_multilabel_forward(packed, input_ids, attention_mask, cfg=CFG):
    B, S = input_ids.shape
    H = cfg["hidden"]

    # Embedding lookups (gather) are plain-JAX glue; LayerNorm is a kernel.
    pos_ids = jnp.arange(S, dtype=jnp.int32)[None, :]
    tok_type = jnp.zeros_like(input_ids)
    emb = (packed["word_emb"][input_ids]
           + packed["pos_emb"][pos_ids]
           + packed["type_emb"][tok_type])
    x2d = embedding_layernorm(emb.reshape(B * S, H),
                              packed["emb_ln_g"], packed["emb_ln_b"])   # bf16
    x = x2d.reshape(B, S, H)

    # BERT extended additive attention mask: (B, 1, S).
    add_mask = ((1.0 - attention_mask.astype(jnp.float32)) * -10000.0).reshape(B, 1, S)

    # All encoder layers in one fused pallas_call (bf16 activations out).
    x = encoder_stack(x, add_mask, packed, cfg)

    # Pooler + Dropout(eval identity) + classifier head in one fused kernel.
    cls_tok = x[:, 0, :]
    return pooler_classifier(cls_tok, packed, cfg["num_labels"])


# ---------------------------------- main ------------------------------------

if __name__ == "__main__":
    key = jax.random.PRNGKey(0)
    k_param, k_ids = jax.random.split(key)

    B, S = 2, 8
    params = init_params(k_param, CFG)
    packed = pack_params(params, CFG)            # one-time repack, not per call
    input_ids = jax.random.randint(k_ids, (B, S), 0, CFG["vocab"], dtype=jnp.int32)
    # Second example has its last two tokens padded out.
    attention_mask = jnp.array([[1, 1, 1, 1, 1, 1, 1, 1],
                                [1, 1, 1, 1, 1, 1, 0, 0]], dtype=jnp.int32)

    logits = bert_multilabel_forward(packed, input_ids, attention_mask)
    logits = jax.block_until_ready(logits)
    assert logits.shape == (B, CFG["num_labels"])
    assert bool(jnp.all(jnp.isfinite(logits)))
    print("KERNEL_OK")
</pallas_src>

<mosaic_0001>
module attributes {stable_mosaic.version = 11 : i64} {
  func.func @_emb_layernorm_kernel(%arg0: i32, %arg1: memref<16x32xf32, #tpu.memory_space<vmem>>, %arg2: memref<1x32xf32, #tpu.memory_space<vmem>>, %arg3: memref<1x32xf32, #tpu.memory_space<vmem>>, %arg4: memref<16x32xbf16, #tpu.memory_space<vmem>>) attributes {dimension_semantics = [#tpu.dimension_semantics<parallel>], iteration_bounds = array<i64: 1>, scalar_prefetch = 0 : i64, scratch_operands = 0 : i64, tpu.core_type = #tpu.core_type<tc>, window_params = [{transform_indices = @transform_0, window_bounds = array<i64: 16, 32>}, {pipeline_mode = #tpu.pipeline_mode<synchronous>, transform_indices = @transform_1, window_bounds = array<i64: 1, 32>}, {pipeline_mode = #tpu.pipeline_mode<synchronous>, transform_indices = @transform_2, window_bounds = array<i64: 1, 32>}, {transform_indices = @transform_3, window_bounds = array<i64: 16, 32>}]} {
    %c0 = arith.constant 0 : index
    %c0_0 = arith.constant 0 : index
    %0 = vector.load %arg1[%c0, %c0_0] : memref<16x32xf32, #tpu.memory_space<vmem>>, vector<16x32xf32>
    %c0_1 = arith.constant 0 : index
    %c0_2 = arith.constant 0 : index
    %1 = vector.load %arg2[%c0_1, %c0_2] : memref<1x32xf32, #tpu.memory_space<vmem>>, vector<1x32xf32>
    %c0_3 = arith.constant 0 : index
    %c0_4 = arith.constant 0 : index
    %2 = vector.load %arg3[%c0_3, %c0_4] : memref<1x32xf32, #tpu.memory_space<vmem>>, vector<1x32xf32>
    %cst = arith.constant dense<0.000000e+00> : vector<16xf32>
    %3 = vector.multi_reduction <add>, %0, %cst [1] : vector<16x32xf32> to vector<16xf32>
    %4 = vector.shape_cast %3 : vector<16xf32> to vector<16x1xf32>
    %cst_5 = arith.constant 3.200000e+01 : f32
    %5 = vector.broadcast %cst_5 : f32 to vector<16x1xf32>
    %6 = arith.divf %4, %5 : vector<16x1xf32>
    %7 = vector.broadcast %6 : vector<16x1xf32> to vector<16x32xf32>
    %8 = arith.subf %0, %7 : vector<16x32xf32>
    %9 = vector.broadcast %6 : vector<16x1xf32> to vector<16x32xf32>
    %10 = arith.subf %0, %9 : vector<16x32xf32>
    %11 = arith.mulf %8, %10 : vector<16x32xf32>
    %cst_6 = arith.constant dense<0.000000e+00> : vector<16xf32>
    %12 = vector.multi_reduction <add>, %11, %cst_6 [1] : vector<16x32xf32> to vector<16xf32>
    %13 = vector.shape_cast %12 : vector<16xf32> to vector<16x1xf32>
    %cst_7 = arith.constant 3.200000e+01 : f32
    %14 = vector.broadcast %cst_7 : f32 to vector<16x1xf32>
    %15 = arith.divf %13, %14 : vector<16x1xf32>
    %16 = vector.broadcast %6 : vector<16x1xf32> to vector<16x32xf32>
    %17 = arith.subf %0, %16 : vector<16x32xf32>
    %cst_8 = arith.constant 9.99999996E-13 : f32
    %18 = vector.broadcast %cst_8 : f32 to vector<16x1xf32>
    %19 = arith.addf %15, %18 : vector<16x1xf32>
    %20 = math.rsqrt %19 : vector<16x1xf32>
    %21 = vector.broadcast %20 : vector<16x1xf32> to vector<16x32xf32>
    %22 = arith.mulf %17, %21 : vector<16x32xf32>
    %23 = vector.broadcast %1 : vector<1x32xf32> to vector<16x32xf32>
    %24 = arith.mulf %22, %23 : vector<16x32xf32>
    %25 = vector.broadcast %2 : vector<1x32xf32> to vector<16x32xf32>
    %26 = arith.addf %24, %25 : vector<16x32xf32>
    %27 = arith.truncf %26 : vector<16x32xf32> to vector<16x32xbf16>
    %c0_9 = arith.constant 0 : index
    %c0_10 = arith.constant 0 : index
    %28 = vector.load %arg4[%c0_9, %c0_10] : memref<16x32xbf16, #tpu.memory_space<vmem>>, vector<16x32xbf16>
    tpu.vector_store %arg4[%c0_9, %c0_10], %27 {strides = array<i32>} : memref<16x32xbf16, #tpu.memory_space<vmem>>, vector<16x32xbf16>,
    return
  }
  func.func @transform_0(%arg0: i32) -> (i32, i32) {
    %c0_i32 = arith.constant 0 : i32
    %c0_i32_0 = arith.constant 0 : i32
    return %arg0, %c0_i32 : i32, i32
  }
  func.func @transform_1(%arg0: i32) -> (i32, i32) {
    %c0_i32 = arith.constant 0 : i32
    %c0_i32_0 = arith.constant 0 : i32
    %c0_i32_1 = arith.constant 0 : i32
    return %c0_i32, %c0_i32_0 : i32, i32
  }
  func.func @transform_2(%arg0: i32) -> (i32, i32) {
    %c0_i32 = arith.constant 0 : i32
    %c0_i32_0 = arith.constant 0 : i32
    %c0_i32_1 = arith.constant 0 : i32
    return %c0_i32, %c0_i32_0 : i32, i32
  }
  func.func @transform_3(%arg0: i32) -> (i32, i32) {
    %c0_i32 = arith.constant 0 : i32
    %c0_i32_0 = arith.constant 0 : i32
    return %arg0, %c0_i32 : i32, i32
  }
}

</mosaic_0001>

<llo_original>
// kernel: tpu_custom_call.1
$region0: #{tpu_custom_call.1}
  #allocation0 [shape = 'u32[]', space=smem, size = 0x4, offset = 0x4, fixed_abs, tag = 'smem constant byte address 0x4 - core index']
  #allocation1 [shape = 'u32[144,128]{1,0:T(1,128)}', space=vmem, size = 0x12000, scoped, tag = 'internal scratch']
  %s0 = inlined_call_operand.hbm [shape: f32[16,32], index: 0, kind: input, shape index: {}]
  %s1 = inlined_call_operand.vmem [shape: f32[1,32], index: 1, kind: input, shape index: {}]
  %s2 = inlined_call_operand.vmem [shape: f32[1,32], index: 2, kind: input, shape index: {}]
  %s3 = inlined_call_operand.hbm [shape: bf16[16,32], index: 3, kind: output, shape index: {}]
  %s4 = sld [smem:[#allocation0]]
  $region26: #{tpu_custom_call.1} parent=0
    _
  %s6 = ssub.s32 1, %s4
  %s7 = scalar_select 0, %s6, %s4
  $region1: #{tpu_custom_call.1} parent=0
    #allocation2 [shape = 'u8[8192]{0}', space=vmem, size = 0x2000, scoped, tag = 'input window, operand 0, single buffered']
    #allocation3 [shape = 's32[1]{0}', space=sflag, size = 0x4, scoped, tag = 'scoped memory for tpu_custom_call.1']
    #allocation4 [shape = 's32[1]{0}', space=sflag, size = 0x4, scoped, tag = 'scoped memory for tpu_custom_call.1']
    #allocation5 [shape = 'u8[4096]{0}', space=vmem, size = 0x1000, scoped, tag = 'output window, operand 0, single buffered']
    %8 = vsyncpa [#allocation3], 0
    %9 = vsyncpa [#allocation4], 0
    // Predicated region
    $region2: #{tpu_custom_call.1} parent=1 // pred_check
      _
    $region3: #{tpu_custom_call.1} parent=1 // pred_check_branch
      %11 = sbr.rel (0) target = $region5
    $region4: #{tpu_custom_call.1} parent=1 // pred_region
      %s13 = ssub.s32 256, 256
      %14 = vsyncadd [#allocation3], %s13
      %s15 = sshll.u32 [#allocation2], 4
      %s16 = int_to_ptr.vmem [resolvable:$true] %s15
      %21 = dma.hbm_to_vmem [thread:$0]  %s0, 256, %s16, [#allocation3], 128, 128, 8
    $region5: #{tpu_custom_call.1} parent=1 // pred_fallthru
      _
    // Predicated region
    $region6: #{tpu_custom_call.1} parent=1 // pred_check
      _
    $region7: #{tpu_custom_call.1} parent=1 // pred_check_branch
      %23 = sbr.rel (0) target = $region9
    $region8: #{tpu_custom_call.1} parent=1 // pred_region
      _
    $region9: #{tpu_custom_call.1} parent=1 // pred_fallthru
      _
    // Predicated region
    $region10: #{tpu_custom_call.1} parent=1 // pred_check
      _
    $region11: #{tpu_custom_call.1} parent=1 // pred_check_branch
      %25 = sbr.rel (0) target = $region13
    $region12: #{tpu_custom_call.1} parent=1 // pred_region
      _
    $region13: #{tpu_custom_call.1} parent=1 // pred_fallthru
      _
    // Predicated region
    $region14: #{tpu_custom_call.1} parent=1 // pred_check
      _
    $region15: #{tpu_custom_call.1} parent=1 // pred_check_branch
      %27 = sbr.rel (0) target = $region17
    $region16: #{tpu_custom_call.1} parent=1 // pred_region
      %28 = dma.done [#allocation3], 256
    $region17: #{tpu_custom_call.1} parent=1 // pred_fallthru
      _
    %v29 = vld [vmem:[#allocation2] sm:$0xff]
    %v30 = vld [vmem:[#allocation2 + $0x8] sm:$0xff]
    %v31 = vld [vmem:[%s1] sm:$0x1]
    %v32 = vld [vmem:[%s2] sm:$0x1]
    %vm33 = vcmask 261120
    %v34 = vsel %vm33, %v29, 0.0
    %35 = vadd.xlane.f32.xlu0 %v34
    %v36 = vpop.xlane.xlu0 %35
    %v37 = vsel %vm33, %v30, 0.0
    %38 = vadd.xlane.f32.xlu0 %v37
    %v39 = vpop.xlane.xlu0 %38
    %v40 = vrcp.pop 32.0
    %v41 = vmul.f32 %v36, %v40
    %v42 = vmul.f32 %v39, %v40
    %v43 = vsub.f32 %v29, %v41
    %v44 = vsub.f32 %v30, %v42
    %v45 = vmul.f32 %v43, %v43
    %v46 = vmul.f32 %v44, %v44
    %v47 = vsel %vm33, %v45, 0.0
    %48 = vadd.xlane.f32.xlu0 %v47
    %v49 = vpop.xlane.xlu0 %48
    %v50 = vsel %vm33, %v46, 0.0
    %51 = vadd.xlane.f32.xlu0 %v50
    %v52 = vpop.xlane.xlu0 %51
    %v53 = vmul.f32 %v49, %v40
    %v54 = vmul.f32 %v52, %v40
    %v55 = vadd.f32 %v53, 1e-12
    %v56 = vadd.f32 %v54, 1e-12
    %v57 = vrsqrt.pop %v55
    %v58 = vrsqrt.pop %v56
    %v59 = vmul.f32 %v43, %v57
    %v60 = vmul.f32 %v44, %v58
    %v62 = vlaneseq
    %v63 = vshrl.u32 %v62, 7
    %v64 = vsub.s32 0, %v63
    %v65 = vrot.slane %v31, %v64
    %v67 = vmul.f32 %v59, %v65
    %v68 = vmul.f32 %v60, %v65
    %v70 = vlaneseq
    %v71 = vshrl.u32 %v70, 7
    %v72 = vsub.s32 0, %v71
    %v73 = vrot.slane %v32, %v72
    %v75 = vadd.f32 %v67, %v73
    %v76 = vadd.f32 %v68, %v73
    %v77 = vpack.c.bf16 %v76, %v75
    %v79 = vunpack.c.l.b16 %v77
    %v80 = vunpack.c.h.b16 %v77
    %v81 = vpack.c.b16 %v79, %v79
    %v82 = vpack.c.b16 %v80, %v80
    %vm85 = vcmask 257024
    %86 = vst.msk [vmem:[#allocation5] sm:$0xf] %vm85, %v81
    %87 = vst.msk [vmem:[#allocation5 + $0x4] sm:$0xf] %vm85, %v82
    // Predicated region
    $region18: #{tpu_custom_call.1} parent=1 // pred_check
      _
    $region19: #{tpu_custom_call.1} parent=1 // pred_check_branch
      %89 = sbr.rel (0) target = $region21
    $region20: #{tpu_custom_call.1} parent=1 // pred_region
      %s91 = ssub.s32 128, 128
      %92 = vsyncadd [#allocation4], %s91
      %s93 = sshll.u32 [#allocation5], 4
      %s94 = int_to_ptr.vmem [resolvable:$true] %s93
      %99 = dma.vmem_to_hbm [thread:$0]  %s94, 128, %s3, [#allocation4], 64, 64, 4
    $region21: #{tpu_custom_call.1} parent=1 // pred_fallthru
      _
    // Predicated region
    $region22: #{tpu_custom_call.1} parent=1 // pred_check
      _
    $region23: #{tpu_custom_call.1} parent=1 // pred_check_branch
      %101 = sbr.rel (0) target = $region25
    $region24: #{tpu_custom_call.1} parent=1 // pred_region
      %102 = dma.done [#allocation4], 128
    $region25: #{tpu_custom_call.1} parent=1 // pred_fallthru
      _
    %103 = vsyncpa [#allocation3], 1
    %104 = vsyncpa [#allocation4], 1

</llo_original>
